<compile_context>
chip_gen: v6e
topology: v6e:2x2x1
jax: 0.10.0
libtpu: 0.0.40
codegen_flags: <defaults>
</compile_context>

<pallas_src>
import jax
import jax.numpy as jnp
from jax.experimental import pallas as pl
from jax.experimental.pallas import tpu as pltpu

# fc0..fc5 dimensions
DIMS = [3, 16, 32, 32, 16, 8, 2]
N_LAYERS = len(DIMS) - 1  # 6


def _mlp_kernel(x_ref,
                w0, b0, w1, b1, w2, b2, w3, b3, w4, b4, w5, b5,
                o_ref):
    """Fused feature-major forward pass: all 6 Linear layers + ReLUs.

    Activations are [features, batch_tile]; the batch dimension sits on the
    128-lane axis for every vreg, MXU result and the final store.
    """

    def layer(w_ref, b_ref, h, relu):
        # W[out, in] @ h[in, tb] -> [out, tb]; f32 accumulation on the MXU.
        y = jnp.dot(w_ref[...], h, preferred_element_type=jnp.float32)
        y = y + b_ref[...]                      # b is [out, 1], broadcast over lanes
        return jnp.maximum(y, 0.0) if relu else y

    h = x_ref[...].astype(jnp.float32)          # [3,  tb]
    h = layer(w0, b0, h, True)                  # [16, tb]
    h = layer(w1, b1, h, True)                  # [32, tb]
    h = layer(w2, b2, h, True)                  # [32, tb]
    h = layer(w3, b3, h, True)                  # [16, tb]
    h = layer(w4, b4, h, True)                  # [8,  tb]
    h = layer(w5, b5, h, False)                 # [2,  tb]  (no activation)
    o_ref[...] = h.astype(o_ref.dtype)


def _pick_batch_tile(B):
    """Largest lane-aligned tile dividing B, preferring >=2 grid steps so the
    batch axis can be sharded across v7x's two TensorCores."""
    candidates = (4096, 2048, 1024, 512, 256, 128)
    for tb in candidates:
        if B % tb == 0 and (B // tb) >= 2:
            return tb
    for tb in candidates:
        if B % tb == 0:
            return tb
    # Block shape equal to the full array dims is always legal.
    return B


def simple_nn_forward(x, params, *, batch_tile=None):
    """x: [B, 3] float32.
    params: list of (W[out, in], b[out, 1]) for the 6 layers (PyTorch layout).
    Returns [B, 2] float32."""
    B, F = x.shape
    assert F == DIMS[0]

    tb = _pick_batch_tile(B) if batch_tile is None else batch_tile
    assert B % tb == 0, "batch must be divisible by batch_tile"
    assert tb == B or tb % 128 == 0, "batch_tile must be a multiple of 128 (lane axis)"

    # Feature-major: batch on the last (lane) axis everywhere inside the kernel.
    xt = x.T                                    # [3, B]

    in_specs = [pl.BlockSpec((DIMS[0], tb), lambda i: (0, i))]
    flat_params = []
    for (w, b) in params:
        # Constant-index blocks: single buffer is enough (saves VMEM + DMAs).
        in_specs.append(pl.BlockSpec(w.shape, lambda i: (0, 0),
                                     pipeline_mode=pl.Buffered(1)))
        in_specs.append(pl.BlockSpec(b.shape, lambda i: (0, 0),
                                     pipeline_mode=pl.Buffered(1)))
        flat_params.extend([w, b])

    out_spec = pl.BlockSpec((DIMS[-1], tb), lambda i: (0, i))

    flops = 2 * B * sum(DIMS[l] * DIMS[l + 1] for l in range(N_LAYERS))
    bytes_accessed = 4 * (B * DIMS[0] + B * DIMS[-1]
                          + sum(int(w.size) + int(b.size) for (w, b) in params))

    out_t = pl.pallas_call(
        _mlp_kernel,
        out_shape=jax.ShapeDtypeStruct((DIMS[-1], B), jnp.float32),
        grid_spec=pltpu.PrefetchScalarGridSpec(
            num_scalar_prefetch=0,
            grid=(B // tb,),
            in_specs=in_specs,
            out_specs=out_spec,
        ),
        compiler_params=pltpu.CompilerParams(
            dimension_semantics=("parallel",),
            # Explicit scoped-VMEM budget: above v5e's 16 MiB default, within
            # v7x's 64 MiB physical (== its 32 MiB scoped default).
            vmem_limit_bytes=32 * 1024 * 1024,
        ),
        cost_estimate=pl.CostEstimate(flops=flops, transcendentals=0,
                                      bytes_accessed=bytes_accessed),
    )(xt, *flat_params)

    # Back to the PyTorch [B, 2] convention (wrapper-side layout plumbing).
    return out_t.T
    # TODO(synk): optional bf16 cast of x/W for v6e/v7x MXU (needs looser tolerance).


def init_params(key):
    """Deterministic synthetic init (PyTorch-like uniform(-1/sqrt(in), 1/sqrt(in))).

    W is [out, in] (PyTorch nn.Linear layout), b is [out, 1]."""
    params = []
    for li in range(N_LAYERS):
        fan_in, fan_out = DIMS[li], DIMS[li + 1]
        key, kw, kb = jax.random.split(key, 3)
        bound = 1.0 / jnp.sqrt(fan_in)
        w = jax.random.uniform(kw, (fan_out, fan_in), jnp.float32, -bound, bound)
        b = jax.random.uniform(kb, (fan_out, 1), jnp.float32, -bound, bound)
        params.append((w, b))
    return params


def reference_forward(x, params):
    h = x
    for li, (w, b) in enumerate(params):
        h = h @ w.T + b[:, 0]
        if li < N_LAYERS - 1:
            h = jnp.maximum(h, 0.0)
    return h


if __name__ == "__main__":
    key = jax.random.PRNGKey(0)
    key, kx = jax.random.split(key)

    B = 256  # small, but enough for 2 lane-aligned tiles of 128 (grid of 2)
    x = jax.random.normal(kx, (B, DIMS[0]), dtype=jnp.float32)
    params = init_params(key)

    out = simple_nn_forward(x, params)
    out = jax.block_until_ready(out)

    ref = reference_forward(x, params)
    assert out.shape == (B, DIMS[-1])
    assert jnp.allclose(out, ref, atol=1e-5, rtol=1e-5)

    print("KERNEL_OK")
</pallas_src>

<mosaic_0001>
module attributes {stable_mosaic.version = 11 : i64} {
  func.func @_mlp_kernel(%arg0: i32, %arg1: memref<3x128xf32, #tpu.memory_space<vmem>>, %arg2: memref<16x3xf32, #tpu.memory_space<vmem>>, %arg3: memref<16x1xf32, #tpu.memory_space<vmem>>, %arg4: memref<32x16xf32, #tpu.memory_space<vmem>>, %arg5: memref<32x1xf32, #tpu.memory_space<vmem>>, %arg6: memref<32x32xf32, #tpu.memory_space<vmem>>, %arg7: memref<32x1xf32, #tpu.memory_space<vmem>>, %arg8: memref<16x32xf32, #tpu.memory_space<vmem>>, %arg9: memref<16x1xf32, #tpu.memory_space<vmem>>, %arg10: memref<8x16xf32, #tpu.memory_space<vmem>>, %arg11: memref<8x1xf32, #tpu.memory_space<vmem>>, %arg12: memref<2x8xf32, #tpu.memory_space<vmem>>, %arg13: memref<2x1xf32, #tpu.memory_space<vmem>>, %arg14: memref<2x128xf32, #tpu.memory_space<vmem>>) attributes {dimension_semantics = [#tpu.dimension_semantics<parallel>], iteration_bounds = array<i64: 2>, scalar_prefetch = 0 : i64, scratch_operands = 0 : i64, tpu.core_type = #tpu.core_type<tc>, window_params = [{transform_indices = @transform_0, window_bounds = array<i64: 3, 128>}, {pipeline_mode = #tpu.pipeline_mode<synchronous>, transform_indices = @transform_1, window_bounds = array<i64: 16, 3>}, {pipeline_mode = #tpu.pipeline_mode<synchronous>, transform_indices = @transform_2, window_bounds = array<i64: 16, 1>}, {pipeline_mode = #tpu.pipeline_mode<synchronous>, transform_indices = @transform_3, window_bounds = array<i64: 32, 16>}, {pipeline_mode = #tpu.pipeline_mode<synchronous>, transform_indices = @transform_4, window_bounds = array<i64: 32, 1>}, {pipeline_mode = #tpu.pipeline_mode<synchronous>, transform_indices = @transform_5, window_bounds = array<i64: 32, 32>}, {pipeline_mode = #tpu.pipeline_mode<synchronous>, transform_indices = @transform_6, window_bounds = array<i64: 32, 1>}, {pipeline_mode = #tpu.pipeline_mode<synchronous>, transform_indices = @transform_7, window_bounds = array<i64: 16, 32>}, {pipeline_mode = #tpu.pipeline_mode<synchronous>, transform_indices = @transform_8, window_bounds = array<i64: 16, 1>}, {pipeline_mode = #tpu.pipeline_mode<synchronous>, transform_indices = @transform_9, window_bounds = array<i64: 8, 16>}, {pipeline_mode = #tpu.pipeline_mode<synchronous>, transform_indices = @transform_10, window_bounds = array<i64: 8, 1>}, {pipeline_mode = #tpu.pipeline_mode<synchronous>, transform_indices = @transform_11, window_bounds = array<i64: 2, 8>}, {pipeline_mode = #tpu.pipeline_mode<synchronous>, transform_indices = @transform_12, window_bounds = array<i64: 2, 1>}, {transform_indices = @transform_13, window_bounds = array<i64: 2, 128>}]} {
    %c0 = arith.constant 0 : index
    %c0_0 = arith.constant 0 : index
    %0 = vector.load %arg1[%c0, %c0_0] : memref<3x128xf32, #tpu.memory_space<vmem>>, vector<3x128xf32>
    %c0_1 = arith.constant 0 : index
    %c0_2 = arith.constant 0 : index
    %1 = vector.load %arg2[%c0_1, %c0_2] : memref<16x3xf32, #tpu.memory_space<vmem>>, vector<16x3xf32>
    %cst = arith.constant dense<0.000000e+00> : vector<16x128xf32>
    %2 = tpu.matmul %1, %0, %cst {dimension_numbers = #tpu.dot_dimension_numbers<[1], [0], [0], [1], [0, 0, 1, 1], [], []>} : vector<16x3xf32>, vector<3x128xf32>, vector<16x128xf32> -> vector<16x128xf32>
    %c0_3 = arith.constant 0 : index
    %c0_4 = arith.constant 0 : index
    %3 = vector.load %arg3[%c0_3, %c0_4] : memref<16x1xf32, #tpu.memory_space<vmem>>, vector<16x1xf32>
    %4 = vector.broadcast %3 : vector<16x1xf32> to vector<16x128xf32>
    %5 = arith.addf %2, %4 : vector<16x128xf32>
    %cst_5 = arith.constant 0.000000e+00 : f32
    %6 = vector.broadcast %cst_5 : f32 to vector<16x128xf32>
    %7 = arith.maximumf %5, %6 : vector<16x128xf32>
    %c0_6 = arith.constant 0 : index
    %c0_7 = arith.constant 0 : index
    %8 = vector.load %arg4[%c0_6, %c0_7] : memref<32x16xf32, #tpu.memory_space<vmem>>, vector<32x16xf32>
    %cst_8 = arith.constant dense<0.000000e+00> : vector<32x128xf32>
    %9 = tpu.matmul %8, %7, %cst_8 {dimension_numbers = #tpu.dot_dimension_numbers<[1], [0], [0], [1], [0, 0, 1, 1], [], []>} : vector<32x16xf32>, vector<16x128xf32>, vector<32x128xf32> -> vector<32x128xf32>
    %c0_9 = arith.constant 0 : index
    %c0_10 = arith.constant 0 : index
    %10 = vector.load %arg5[%c0_9, %c0_10] : memref<32x1xf32, #tpu.memory_space<vmem>>, vector<32x1xf32>
    %11 = vector.broadcast %10 : vector<32x1xf32> to vector<32x128xf32>
    %12 = arith.addf %9, %11 : vector<32x128xf32>
    %cst_11 = arith.constant 0.000000e+00 : f32
    %13 = vector.broadcast %cst_11 : f32 to vector<32x128xf32>
    %14 = arith.maximumf %12, %13 : vector<32x128xf32>
    %c0_12 = arith.constant 0 : index
    %c0_13 = arith.constant 0 : index
    %15 = vector.load %arg6[%c0_12, %c0_13] : memref<32x32xf32, #tpu.memory_space<vmem>>, vector<32x32xf32>
    %cst_14 = arith.constant dense<0.000000e+00> : vector<32x128xf32>
    %16 = tpu.matmul %15, %14, %cst_14 {dimension_numbers = #tpu.dot_dimension_numbers<[1], [0], [0], [1], [0, 0, 1, 1], [], []>} : vector<32x32xf32>, vector<32x128xf32>, vector<32x128xf32> -> vector<32x128xf32>
    %c0_15 = arith.constant 0 : index
    %c0_16 = arith.constant 0 : index
    %17 = vector.load %arg7[%c0_15, %c0_16] : memref<32x1xf32, #tpu.memory_space<vmem>>, vector<32x1xf32>
    %18 = vector.broadcast %17 : vector<32x1xf32> to vector<32x128xf32>
    %19 = arith.addf %16, %18 : vector<32x128xf32>
    %cst_17 = arith.constant 0.000000e+00 : f32
    %20 = vector.broadcast %cst_17 : f32 to vector<32x128xf32>
    %21 = arith.maximumf %19, %20 : vector<32x128xf32>
    %c0_18 = arith.constant 0 : index
    %c0_19 = arith.constant 0 : index
    %22 = vector.load %arg8[%c0_18, %c0_19] : memref<16x32xf32, #tpu.memory_space<vmem>>, vector<16x32xf32>
    %cst_20 = arith.constant dense<0.000000e+00> : vector<16x128xf32>
    %23 = tpu.matmul %22, %21, %cst_20 {dimension_numbers = #tpu.dot_dimension_numbers<[1], [0], [0], [1], [0, 0, 1, 1], [], []>} : vector<16x32xf32>, vector<32x128xf32>, vector<16x128xf32> -> vector<16x128xf32>
    %c0_21 = arith.constant 0 : index
    %c0_22 = arith.constant 0 : index
    %24 = vector.load %arg9[%c0_21, %c0_22] : memref<16x1xf32, #tpu.memory_space<vmem>>, vector<16x1xf32>
    %25 = vector.broadcast %24 : vector<16x1xf32> to vector<16x128xf32>
    %26 = arith.addf %23, %25 : vector<16x128xf32>
    %cst_23 = arith.constant 0.000000e+00 : f32
    %27 = vector.broadcast %cst_23 : f32 to vector<16x128xf32>
    %28 = arith.maximumf %26, %27 : vector<16x128xf32>
    %c0_24 = arith.constant 0 : index
    %c0_25 = arith.constant 0 : index
    %29 = vector.load %arg10[%c0_24, %c0_25] : memref<8x16xf32, #tpu.memory_space<vmem>>, vector<8x16xf32>
    %cst_26 = arith.constant dense<0.000000e+00> : vector<8x128xf32>
    %30 = tpu.matmul %29, %28, %cst_26 {dimension_numbers = #tpu.dot_dimension_numbers<[1], [0], [0], [1], [0, 0, 1, 1], [], []>} : vector<8x16xf32>, vector<16x128xf32>, vector<8x128xf32> -> vector<8x128xf32>
    %c0_27 = arith.constant 0 : index
    %c0_28 = arith.constant 0 : index
    %31 = vector.load %arg11[%c0_27, %c0_28] : memref<8x1xf32, #tpu.memory_space<vmem>>, vector<8x1xf32>
    %32 = vector.broadcast %31 : vector<8x1xf32> to vector<8x128xf32>
    %33 = arith.addf %30, %32 : vector<8x128xf32>
    %cst_29 = arith.constant 0.000000e+00 : f32
    %34 = vector.broadcast %cst_29 : f32 to vector<8x128xf32>
    %35 = arith.maximumf %33, %34 : vector<8x128xf32>
    %c0_30 = arith.constant 0 : index
    %c0_31 = arith.constant 0 : index
    %36 = vector.load %arg12[%c0_30, %c0_31] : memref<2x8xf32, #tpu.memory_space<vmem>>, vector<2x8xf32>
    %cst_32 = arith.constant dense<0.000000e+00> : vector<2x128xf32>
    %37 = tpu.matmul %36, %35, %cst_32 {dimension_numbers = #tpu.dot_dimension_numbers<[1], [0], [0], [1], [0, 0, 1, 1], [], []>} : vector<2x8xf32>, vector<8x128xf32>, vector<2x128xf32> -> vector<2x128xf32>
    %c0_33 = arith.constant 0 : index
    %c0_34 = arith.constant 0 : index
    %38 = vector.load %arg13[%c0_33, %c0_34] : memref<2x1xf32, #tpu.memory_space<vmem>>, vector<2x1xf32>
    %39 = vector.broadcast %38 : vector<2x1xf32> to vector<2x128xf32>
    %40 = arith.addf %37, %39 : vector<2x128xf32>
    %c0_35 = arith.constant 0 : index
    %c0_36 = arith.constant 0 : index
    %41 = vector.load %arg14[%c0_35, %c0_36] : memref<2x128xf32, #tpu.memory_space<vmem>>, vector<2x128xf32>
    tpu.vector_store %arg14[%c0_35, %c0_36], %40 {strides = array<i32>} : memref<2x128xf32, #tpu.memory_space<vmem>>, vector<2x128xf32>,
    return
  }
  func.func @transform_0(%arg0: i32) -> (i32, i32) {
    %c0_i32 = arith.constant 0 : i32
    %c0_i32_0 = arith.constant 0 : i32
    return %c0_i32, %arg0 : i32, i32
  }
  func.func @transform_1(%arg0: i32) -> (i32, i32) {
    %c0_i32 = arith.constant 0 : i32
    %c0_i32_0 = arith.constant 0 : i32
    %c0_i32_1 = arith.constant 0 : i32
    return %c0_i32, %c0_i32_0 : i32, i32
  }
  func.func @transform_2(%arg0: i32) -> (i32, i32) {
    %c0_i32 = arith.constant 0 : i32
    %c0_i32_0 = arith.constant 0 : i32
    %c0_i32_1 = arith.constant 0 : i32
    return %c0_i32, %c0_i32_0 : i32, i32
  }
  func.func @transform_3(%arg0: i32) -> (i32, i32) {
    %c0_i32 = arith.constant 0 : i32
    %c0_i32_0 = arith.constant 0 : i32
    %c0_i32_1 = arith.constant 0 : i32
    return %c0_i32, %c0_i32_0 : i32, i32
  }
  func.func @transform_4(%arg0: i32) -> (i32, i32) {
    %c0_i32 = arith.constant 0 : i32
    %c0_i32_0 = arith.constant 0 : i32
    %c0_i32_1 = arith.constant 0 : i32
    return %c0_i32, %c0_i32_0 : i32, i32
  }
  func.func @transform_5(%arg0: i32) -> (i32, i32) {
    %c0_i32 = arith.constant 0 : i32
    %c0_i32_0 = arith.constant 0 : i32
    %c0_i32_1 = arith.constant 0 : i32
    return %c0_i32, %c0_i32_0 : i32, i32
  }
  func.func @transform_6(%arg0: i32) -> (i32, i32) {
    %c0_i32 = arith.constant 0 : i32
    %c0_i32_0 = arith.constant 0 : i32
    %c0_i32_1 = arith.constant 0 : i32
    return %c0_i32, %c0_i32_0 : i32, i32
  }
  func.func @transform_7(%arg0: i32) -> (i32, i32) {
    %c0_i32 = arith.constant 0 : i32
    %c0_i32_0 = arith.constant 0 : i32
    %c0_i32_1 = arith.constant 0 : i32
    return %c0_i32, %c0_i32_0 : i32, i32
  }
  func.func @transform_8(%arg0: i32) -> (i32, i32) {
    %c0_i32 = arith.constant 0 : i32
    %c0_i32_0 = arith.constant 0 : i32
    %c0_i32_1 = arith.constant 0 : i32
    return %c0_i32, %c0_i32_0 : i32, i32
  }
  func.func @transform_9(%arg0: i32) -> (i32, i32) {
    %c0_i32 = arith.constant 0 : i32
    %c0_i32_0 = arith.constant 0 : i32
    %c0_i32_1 = arith.constant 0 : i32
    return %c0_i32, %c0_i32_0 : i32, i32
  }
  func.func @transform_10(%arg0: i32) -> (i32, i32) {
    %c0_i32 = arith.constant 0 : i32
    %c0_i32_0 = arith.constant 0 : i32
    %c0_i32_1 = arith.constant 0 : i32
    return %c0_i32, %c0_i32_0 : i32, i32
  }
  func.func @transform_11(%arg0: i32) -> (i32, i32) {
    %c0_i32 = arith.constant 0 : i32
    %c0_i32_0 = arith.constant 0 : i32
    %c0_i32_1 = arith.constant 0 : i32
    return %c0_i32, %c0_i32_0 : i32, i32
  }
  func.func @transform_12(%arg0: i32) -> (i32, i32) {
    %c0_i32 = arith.constant 0 : i32
    %c0_i32_0 = arith.constant 0 : i32
    %c0_i32_1 = arith.constant 0 : i32
    return %c0_i32, %c0_i32_0 : i32, i32
  }
  func.func @transform_13(%arg0: i32) -> (i32, i32) {
    %c0_i32 = arith.constant 0 : i32
    %c0_i32_0 = arith.constant 0 : i32
    return %c0_i32, %arg0 : i32, i32
  }
}

</mosaic_0001>

<llo_original>
// kernel: tpu_custom_call.1
$region0: #{tpu_custom_call.1}
  #allocation0 [shape = 'u32[]', space=smem, size = 0x4, offset = 0x4, fixed_abs, tag = 'smem constant byte address 0x4 - core index']
  #allocation1 [shape = 'u32[144,128]{1,0:T(1,128)}', space=vmem, size = 0x12000, scoped, tag = 'internal scratch']
  %s0 = inlined_call_operand.vmem [shape: f32[3,256], index: 0, kind: input, shape index: {}]
  %s1 = inlined_call_operand.vmem [shape: f32[16,3], index: 1, kind: input, shape index: {}]
  %s2 = inlined_call_operand.vmem [shape: f32[16,1], index: 2, kind: input, shape index: {}]
  %s3 = inlined_call_operand.vmem [shape: f32[32,16], index: 3, kind: input, shape index: {}]
  %s4 = inlined_call_operand.vmem [shape: f32[32,1], index: 4, kind: input, shape index: {}]
  %s5 = inlined_call_operand.vmem [shape: f32[32,32], index: 5, kind: input, shape index: {}]
  %s6 = inlined_call_operand.vmem [shape: f32[32,1], index: 6, kind: input, shape index: {}]
  %s7 = inlined_call_operand.vmem [shape: f32[16,32], index: 7, kind: input, shape index: {}]
  %s8 = inlined_call_operand.vmem [shape: f32[16,1], index: 8, kind: input, shape index: {}]
  %s9 = inlined_call_operand.vmem [shape: f32[8,16], index: 9, kind: input, shape index: {}]
  %s10 = inlined_call_operand.vmem [shape: f32[8,1], index: 10, kind: input, shape index: {}]
  %s11 = inlined_call_operand.vmem [shape: f32[2,8], index: 11, kind: input, shape index: {}]
  %s12 = inlined_call_operand.vmem [shape: f32[2,1], index: 12, kind: input, shape index: {}]
  %s13 = inlined_call_operand.hbm [shape: f32[2,256], index: 13, kind: output, shape index: {}]
  %s14 = sld [smem:[#allocation0]]
  $region85: #{tpu_custom_call.1} parent=0
    _
  %s16 = ssub.s32 1, %s14
  %s17 = scalar_select 0, %s16, %s14
  $region1: #{tpu_custom_call.1} parent=0
    #allocation2 [shape = 'u8[2048]{0}', space=vmem, size = 0x800, scoped, tag = 'output window, operand 0']
    #allocation3 [shape = 's32[2]{0}', space=sflag, size = 0x8, scoped, tag = 'scoped memory for tpu_custom_call.1']
    %18 = vsyncpa [#allocation3], 0
    %s19 = scalar_lea.sflag [#allocation3], 1
    %20 = vsyncpa %s19, 0
    loop: start=0, step=1, limit=4
    $region2: #{tpu_custom_call.1} parent=1 // loop_pre_header
      _
    $region3: #{tpu_custom_call.1} parent=1 // loop_header
      %s22 = sphi 0, %s26
      %p23 = scmp.ge.s32.totalorder %s22, 4
      %s32 = sphi 0, %s34
      %s35 = sphi 0, %s32
      %s36 = sphi 0, %s35
      %s52 = sphi 0, %s36
      %s56 = sphi 0, %s56
      %s58 = sphi 0, %s56
      %s59 = sphi 0, %s58
      %s73 = sphi 0, %s59
      %s77 = sphi 0, %s77
      %s79 = sphi 0, %s77
      %s80 = sphi 0, %s79
      %s94 = sphi 0, %s80
      %s98 = sphi 0, %s98
      %s100 = sphi 0, %s98
      %s101 = sphi 0, %s100
      %s115 = sphi 0, %s101
      %s119 = sphi 0, %s119
      %s121 = sphi 0, %s119
      %s122 = sphi 0, %s121
      %s136 = sphi 0, %s122
      %s140 = sphi 0, %s140
      %s142 = sphi 0, %s140
      %s143 = sphi 0, %s142
      %s157 = sphi 0, %s143
      %s161 = sphi 0, %s161
      %s163 = sphi 0, %s161
      %s164 = sphi 0, %s163
      %s178 = sphi 0, %s164
      %s182 = sphi 0, %s182
      %s184 = sphi 0, %s182
      %s185 = sphi 0, %s184
      %s199 = sphi 0, %s185
      %s203 = sphi 0, %s203
      %s205 = sphi 0, %s203
      %s206 = sphi 0, %s205
      %s220 = sphi 0, %s206
      %s224 = sphi 0, %s224
      %s226 = sphi 0, %s224
      %s227 = sphi 0, %s226
      %s241 = sphi 0, %s227
      %s245 = sphi 0, %s245
      %s247 = sphi 0, %s245
      %s248 = sphi 0, %s247
      %s262 = sphi 0, %s248
      %s266 = sphi 0, %s266
      %s268 = sphi 0, %s266
      %s269 = sphi 0, %s268
      %s283 = sphi 0, %s269
      %s287 = sphi 0, %s287
      %s289 = sphi 0, %s287
      %s290 = sphi 0, %s289
      %s304 = sphi 0, %s290
      %s310 = sphi 0, %s312
      %s313 = sphi 0, %s310
      %s314 = sphi 0, %s313
      %s330 = sphi 0, %s314
    $region4: #{tpu_custom_call.1} parent=1 // loop_header_branch
      %25 = sbr.rel (%p23) target = $region8
    $region5: #{tpu_custom_call.1} parent=1 // loop_body
      %s27 = ssub.s32 %s22, 1
      %s28 = ssub.s32 %s22, 2
      %s29 = sadd.s32 %s22, 1
      %s30 = ssub.s32 %s22, %s29
      %p31 = scmp.eq.s32.totalorder %s30, 0
      %s33 = sadd.s32 %s32, 1
      %s34 = scalar_select %p31, %s32, %s33
      %p37 = pneg %p31
      %p38 = scmp.eq.s32.totalorder %s22, 1
      %p39 = por %p37, %p38
      %p40 = scmp.ne.s32.totalorder %s32, %s35
      %p41 = scmp.eq.s32.totalorder %s22, 0
      %p42 = por %p40, %p41
      %p43 = scmp.ne.s32.totalorder %s32, %s35
      %p44 = scmp.eq.s32.totalorder %s27, 1
      %p45 = por %p43, %p44
      %p46 = scmp.ne.s32.totalorder %s35, %s36
      %p47 = scmp.eq.s32.totalorder %s27, 0
      %p48 = por %p46, %p47
      %p49 = scmp.ne.s32.totalorder %s35, %s36
      %p50 = scmp.eq.s32.totalorder %s28, 1
      %p51 = por %p49, %p50
      %p53 = scmp.ne.s32.totalorder %s36, %s52
      %p54 = scmp.eq.s32.totalorder %s28, 0
      %p55 = por %p53, %p54
      %s57 = sadd.s32 %s56, 1
      %p60 = scmp.eq.s32.totalorder %s22, 1
      %p61 = scmp.ne.s32.totalorder %s56, %s58
      %p62 = scmp.eq.s32.totalorder %s22, 0
      %p63 = por %p61, %p62
      %p64 = scmp.ne.s32.totalorder %s56, %s58
      %p65 = scmp.eq.s32.totalorder %s27, 1
      %p66 = por %p64, %p65
      %p67 = scmp.ne.s32.totalorder %s58, %s59
      %p68 = scmp.eq.s32.totalorder %s27, 0
      %p69 = por %p67, %p68
      %p70 = scmp.ne.s32.totalorder %s58, %s59
      %p71 = scmp.eq.s32.totalorder %s28, 1
      %p72 = por %p70, %p71
      %p74 = scmp.ne.s32.totalorder %s59, %s73
      %p75 = scmp.eq.s32.totalorder %s28, 0
      %p76 = por %p74, %p75
      %s78 = sadd.s32 %s77, 1
      %p81 = scmp.eq.s32.totalorder %s22, 1
      %p82 = scmp.ne.s32.totalorder %s77, %s79
      %p83 = scmp.eq.s32.totalorder %s22, 0
      %p84 = por %p82, %p83
      %p85 = scmp.ne.s32.totalorder %s77, %s79
      %p86 = scmp.eq.s32.totalorder %s27, 1
      %p87 = por %p85, %p86
      %p88 = scmp.ne.s32.totalorder %s79, %s80
      %p89 = scmp.eq.s32.totalorder %s27, 0
      %p90 = por %p88, %p89
      %p91 = scmp.ne.s32.totalorder %s79, %s80
      %p92 = scmp.eq.s32.totalorder %s28, 1
      %p93 = por %p91, %p92
      %p95 = scmp.ne.s32.totalorder %s80, %s94
      %p96 = scmp.eq.s32.totalorder %s28, 0
      %p97 = por %p95, %p96
      %s99 = sadd.s32 %s98, 1
      %p102 = scmp.eq.s32.totalorder %s22, 1
      %p103 = scmp.ne.s32.totalorder %s98, %s100
      %p104 = scmp.eq.s32.totalorder %s22, 0
      %p105 = por %p103, %p104
      %p106 = scmp.ne.s32.totalorder %s98, %s100
      %p107 = scmp.eq.s32.totalorder %s27, 1
      %p108 = por %p106, %p107
      %p109 = scmp.ne.s32.totalorder %s100, %s101
      %p110 = scmp.eq.s32.totalorder %s27, 0
      %p111 = por %p109, %p110
      %p112 = scmp.ne.s32.totalorder %s100, %s101
      %p113 = scmp.eq.s32.totalorder %s28, 1
      %p114 = por %p112, %p113
      %p116 = scmp.ne.s32.totalorder %s101, %s115
      %p117 = scmp.eq.s32.totalorder %s28, 0
      %p118 = por %p116, %p117
      %s120 = sadd.s32 %s119, 1
      %p123 = scmp.eq.s32.totalorder %s22, 1
      %p124 = scmp.ne.s32.totalorder %s119, %s121
      %p125 = scmp.eq.s32.totalorder %s22, 0
      %p126 = por %p124, %p125
      %p127 = scmp.ne.s32.totalorder %s119, %s121
      %p128 = scmp.eq.s32.totalorder %s27, 1
      %p129 = por %p127, %p128
      %p130 = scmp.ne.s32.totalorder %s121, %s122
      %p131 = scmp.eq.s32.totalorder %s27, 0
      %p132 = por %p130, %p131
      %p133 = scmp.ne.s32.totalorder %s121, %s122
      %p134 = scmp.eq.s32.totalorder %s28, 1
      %p135 = por %p133, %p134
      %p137 = scmp.ne.s32.totalorder %s122, %s136
      %p138 = scmp.eq.s32.totalorder %s28, 0
      %p139 = por %p137, %p138
      %s141 = sadd.s32 %s140, 1
      %p144 = scmp.eq.s32.totalorder %s22, 1
      %p145 = scmp.ne.s32.totalorder %s140, %s142
      %p146 = scmp.eq.s32.totalorder %s22, 0
      %p147 = por %p145, %p146
      %p148 = scmp.ne.s32.totalorder %s140, %s142
      %p149 = scmp.eq.s32.totalorder %s27, 1
      %p150 = por %p148, %p149
      %p151 = scmp.ne.s32.totalorder %s142, %s143
      %p152 = scmp.eq.s32.totalorder %s27, 0
      %p153 = por %p151, %p152
      %p154 = scmp.ne.s32.totalorder %s142, %s143
      %p155 = scmp.eq.s32.totalorder %s28, 1
      %p156 = por %p154, %p155
      %p158 = scmp.ne.s32.totalorder %s143, %s157
      %p159 = scmp.eq.s32.totalorder %s28, 0
      %p160 = por %p158, %p159
      %s162 = sadd.s32 %s161, 1
      %p165 = scmp.eq.s32.totalorder %s22, 1
      %p166 = scmp.ne.s32.totalorder %s161, %s163
      %p167 = scmp.eq.s32.totalorder %s22, 0
      %p168 = por %p166, %p167
      %p169 = scmp.ne.s32.totalorder %s161, %s163
      %p170 = scmp.eq.s32.totalorder %s27, 1
      %p171 = por %p169, %p170
      %p172 = scmp.ne.s32.totalorder %s163, %s164
      %p173 = scmp.eq.s32.totalorder %s27, 0
      %p174 = por %p172, %p173
      %p175 = scmp.ne.s32.totalorder %s163, %s164
      %p176 = scmp.eq.s32.totalorder %s28, 1
      %p177 = por %p175, %p176
      %p179 = scmp.ne.s32.totalorder %s164, %s178
      %p180 = scmp.eq.s32.totalorder %s28, 0
      %p181 = por %p179, %p180
      %s183 = sadd.s32 %s182, 1
      %p186 = scmp.eq.s32.totalorder %s22, 1
      %p187 = scmp.ne.s32.totalorder %s182, %s184
      %p188 = scmp.eq.s32.totalorder %s22, 0
      %p189 = por %p187, %p188
      %p190 = scmp.ne.s32.totalorder %s182, %s184
      %p191 = scmp.eq.s32.totalorder %s27, 1
      %p192 = por %p190, %p191
      %p193 = scmp.ne.s32.totalorder %s184, %s185
      %p194 = scmp.eq.s32.totalorder %s27, 0
      %p195 = por %p193, %p194
      %p196 = scmp.ne.s32.totalorder %s184, %s185
      %p197 = scmp.eq.s32.totalorder %s28, 1
      %p198 = por %p196, %p197
      %p200 = scmp.ne.s32.totalorder %s185, %s199
      %p201 = scmp.eq.s32.totalorder %s28, 0
      %p202 = por %p200, %p201
      %s204 = sadd.s32 %s203, 1
      %p207 = scmp.eq.s32.totalorder %s22, 1
      %p208 = scmp.ne.s32.totalorder %s203, %s205
      %p209 = scmp.eq.s32.totalorder %s22, 0
      %p210 = por %p208, %p209
      %p211 = scmp.ne.s32.totalorder %s203, %s205
      %p212 = scmp.eq.s32.totalorder %s27, 1
      %p213 = por %p211, %p212
      %p214 = scmp.ne.s32.totalorder %s205, %s206
      %p215 = scmp.eq.s32.totalorder %s27, 0
      %p216 = por %p214, %p215
      %p217 = scmp.ne.s32.totalorder %s205, %s206
      %p218 = scmp.eq.s32.totalorder %s28, 1
      %p219 = por %p217, %p218
      %p221 = scmp.ne.s32.totalorder %s206, %s220
      %p222 = scmp.eq.s32.totalorder %s28, 0
      %p223 = por %p221, %p222
      %s225 = sadd.s32 %s224, 1
      %p228 = scmp.eq.s32.totalorder %s22, 1
      %p229 = scmp.ne.s32.totalorder %s224, %s226
      %p230 = scmp.eq.s32.totalorder %s22, 0
      %p231 = por %p229, %p230
      %p232 = scmp.ne.s32.totalorder %s224, %s226
      %p233 = scmp.eq.s32.totalorder %s27, 1
      %p234 = por %p232, %p233
      %p235 = scmp.ne.s32.totalorder %s226, %s227
      %p236 = scmp.eq.s32.totalorder %s27, 0
      %p237 = por %p235, %p236
      %p238 = scmp.ne.s32.totalorder %s226, %s227
      %p239 = scmp.eq.s32.totalorder %s28, 1
      %p240 = por %p238, %p239
      %p242 = scmp.ne.s32.totalorder %s227, %s241
      %p243 = scmp.eq.s32.totalorder %s28, 0
      %p244 = por %p242, %p243
      %s246 = sadd.s32 %s245, 1
      %p249 = scmp.eq.s32.totalorder %s22, 1
      %p250 = scmp.ne.s32.totalorder %s245, %s247
      %p251 = scmp.eq.s32.totalorder %s22, 0
      %p252 = por %p250, %p251
      %p253 = scmp.ne.s32.totalorder %s245, %s247
      %p254 = scmp.eq.s32.totalorder %s27, 1
      %p255 = por %p253, %p254
      %p256 = scmp.ne.s32.totalorder %s247, %s248
      %p257 = scmp.eq.s32.totalorder %s27, 0
      %p258 = por %p256, %p257
      %p259 = scmp.ne.s32.totalorder %s247, %s248
      %p260 = scmp.eq.s32.totalorder %s28, 1
      %p261 = por %p259, %p260
      %p263 = scmp.ne.s32.totalorder %s248, %s262
      %p264 = scmp.eq.s32.totalorder %s28, 0
      %p265 = por %p263, %p264
      %s267 = sadd.s32 %s266, 1
      %p270 = scmp.eq.s32.totalorder %s22, 1
      %p271 = scmp.ne.s32.totalorder %s266, %s268
      %p272 = scmp.eq.s32.totalorder %s22, 0
      %p273 = por %p271, %p272
      %p274 = scmp.ne.s32.totalorder %s266, %s268
      %p275 = scmp.eq.s32.totalorder %s27, 1
      %p276 = por %p274, %p275
      %p277 = scmp.ne.s32.totalorder %s268, %s269
      %p278 = scmp.eq.s32.totalorder %s27, 0
      %p279 = por %p277, %p278
      %p280 = scmp.ne.s32.totalorder %s268, %s269
      %p281 = scmp.eq.s32.totalorder %s28, 1
      %p282 = por %p280, %p281
      %p284 = scmp.ne.s32.totalorder %s269, %s283
      %p285 = scmp.eq.s32.totalorder %s28, 0
      %p286 = por %p284, %p285
      %s288 = sadd.s32 %s287, 1
      %p291 = scmp.eq.s32.totalorder %s22, 1
      %p292 = scmp.ne.s32.totalorder %s287, %s289
      %p293 = scmp.eq.s32.totalorder %s22, 0
      %p294 = por %p292, %p293
      %p295 = scmp.ne.s32.totalorder %s287, %s289
      %p296 = scmp.eq.s32.totalorder %s27, 1
      %p297 = por %p295, %p296
      %p298 = scmp.ne.s32.totalorder %s289, %s290
      %p299 = scmp.eq.s32.totalorder %s27, 0
      %p300 = por %p298, %p299
      %p301 = scmp.ne.s32.totalorder %s289, %s290
      %p302 = scmp.eq.s32.totalorder %s28, 1
      %p303 = por %p301, %p302
      %p305 = scmp.ne.s32.totalorder %s290, %s304
      %p306 = scmp.eq.s32.totalorder %s28, 0
      %p307 = por %p305, %p306
      %s308 = ssub.s32 %s22, %s29
      %p309 = scmp.eq.s32.totalorder %s308, 0
      %s311 = sadd.s32 %s310, 1
      %s312 = scalar_select %p309, %s310, %s311
      %p315 = pneg %p309
      %p316 = scmp.eq.s32.totalorder %s22, 1
      %p317 = por %p315, %p316
      %p318 = scmp.ne.s32.totalorder %s310, %s313
      %p319 = scmp.eq.s32.totalorder %s22, 0
      %p320 = por %p318, %p319
      %p321 = scmp.ne.s32.totalorder %s310, %s313
      %p322 = scmp.eq.s32.totalorder %s27, 1
      %p323 = por %p321, %p322
      %p324 = scmp.ne.s32.totalorder %s313, %s314
      %p325 = scmp.eq.s32.totalorder %s27, 0
      %p326 = por %p324, %p325
      %p327 = scmp.ne.s32.totalorder %s313, %s314
      %p328 = scmp.eq.s32.totalorder %s28, 1
      %p329 = por %p327, %p328
      %p331 = scmp.ne.s32.totalorder %s314, %s330
      %p332 = scmp.eq.s32.totalorder %s28, 0
      %p333 = por %p331, %p332
      %p334 = scmp.le.s32.totalorder 1, %s22
      %p335 = scmp.lt.s32.totalorder %s22, 3
      %p336 = pnand %p334, %p335
      %p337 = pneg %p336
      // Predicated region
      $region9: #{tpu_custom_call.1} parent=5 // pred_check
        _
      $region10: #{tpu_custom_call.1} parent=5 // pred_check_branch
        %339 = sbr.rel (%p336) target = $region12
      $region11: #{tpu_custom_call.1} parent=5 // pred_region
        %s340 = ssub.s32 %s22, 1
        // Predicated region
        $region13: #{tpu_custom_call.1} parent=11 // pred_check
          %p341 = pneg %p69
        $region14: #{tpu_custom_call.1} parent=11 // pred_check_branch
          %343 = sbr.rel (%p341) target = $region16
        $region15: #{tpu_custom_call.1} parent=11 // pred_region
          _
        $region16: #{tpu_custom_call.1} parent=11 // pred_fallthru
          _
        // Predicated region
        $region17: #{tpu_custom_call.1} parent=11 // pred_check
          %p344 = pneg %p90
        $region18: #{tpu_custom_call.1} parent=11 // pred_check_branch
          %346 = sbr.rel (%p344) target = $region20
        $region19: #{tpu_custom_call.1} parent=11 // pred_region
          _
        $region20: #{tpu_custom_call.1} parent=11 // pred_fallthru
          _
        // Predicated region
        $region21: #{tpu_custom_call.1} parent=11 // pred_check
          %p347 = pneg %p111
        $region22: #{tpu_custom_call.1} parent=11 // pred_check_branch
          %349 = sbr.rel (%p347) target = $region24
        $region23: #{tpu_custom_call.1} parent=11 // pred_region
          _
        $region24: #{tpu_custom_call.1} parent=11 // pred_fallthru
          _
        // Predicated region
        $region25: #{tpu_custom_call.1} parent=11 // pred_check
          %p350 = pneg %p132
        $region26: #{tpu_custom_call.1} parent=11 // pred_check_branch
          %352 = sbr.rel (%p350) target = $region28
        $region27: #{tpu_custom_call.1} parent=11 // pred_region
          _
        $region28: #{tpu_custom_call.1} parent=11 // pred_fallthru
          _
        // Predicated region
        $region29: #{tpu_custom_call.1} parent=11 // pred_check
          %p353 = pneg %p153
        $region30: #{tpu_custom_call.1} parent=11 // pred_check_branch
          %355 = sbr.rel (%p353) target = $region32
        $region31: #{tpu_custom_call.1} parent=11 // pred_region
          _
        $region32: #{tpu_custom_call.1} parent=11 // pred_fallthru
          _
        // Predicated region
        $region33: #{tpu_custom_call.1} parent=11 // pred_check
          %p356 = pneg %p174
        $region34: #{tpu_custom_call.1} parent=11 // pred_check_branch
          %358 = sbr.rel (%p356) target = $region36
        $region35: #{tpu_custom_call.1} parent=11 // pred_region
          _
        $region36: #{tpu_custom_call.1} parent=11 // pred_fallthru
          _
        // Predicated region
        $region37: #{tpu_custom_call.1} parent=11 // pred_check
          %p359 = pneg %p195
        $region38: #{tpu_custom_call.1} parent=11 // pred_check_branch
          %361 = sbr.rel (%p359) target = $region40
        $region39: #{tpu_custom_call.1} parent=11 // pred_region
          _
        $region40: #{tpu_custom_call.1} parent=11 // pred_fallthru
          _
        // Predicated region
        $region41: #{tpu_custom_call.1} parent=11 // pred_check
          %p362 = pneg %p216
        $region42: #{tpu_custom_call.1} parent=11 // pred_check_branch
          %364 = sbr.rel (%p362) target = $region44
        $region43: #{tpu_custom_call.1} parent=11 // pred_region
          _
        $region44: #{tpu_custom_call.1} parent=11 // pred_fallthru
          _
        // Predicated region
        $region45: #{tpu_custom_call.1} parent=11 // pred_check
          %p365 = pneg %p237
        $region46: #{tpu_custom_call.1} parent=11 // pred_check_branch
          %367 = sbr.rel (%p365) target = $region48
        $region47: #{tpu_custom_call.1} parent=11 // pred_region
          _
        $region48: #{tpu_custom_call.1} parent=11 // pred_fallthru
          _
        // Predicated region
        $region49: #{tpu_custom_call.1} parent=11 // pred_check
          %p368 = pneg %p258
        $region50: #{tpu_custom_call.1} parent=11 // pred_check_branch
          %370 = sbr.rel (%p368) target = $region52
        $region51: #{tpu_custom_call.1} parent=11 // pred_region
          _
        $region52: #{tpu_custom_call.1} parent=11 // pred_fallthru
          _
        // Predicated region
        $region53: #{tpu_custom_call.1} parent=11 // pred_check
          %p371 = pneg %p279
        $region54: #{tpu_custom_call.1} parent=11 // pred_check_branch
          %373 = sbr.rel (%p371) target = $region56
        $region55: #{tpu_custom_call.1} parent=11 // pred_region
          _
        $region56: #{tpu_custom_call.1} parent=11 // pred_fallthru
          _
        // Predicated region
        $region57: #{tpu_custom_call.1} parent=11 // pred_check
          %p374 = pneg %p300
        $region58: #{tpu_custom_call.1} parent=11 // pred_check_branch
          %376 = sbr.rel (%p374) target = $region60
        $region59: #{tpu_custom_call.1} parent=11 // pred_region
          _
        $region60: #{tpu_custom_call.1} parent=11 // pred_fallthru
          _
      $region12: #{tpu_custom_call.1} parent=5 // pred_fallthru
        _
      %p377 = scmp.lt.s32.totalorder %s22, 2
      // Predicated region
      $region61: #{tpu_custom_call.1} parent=5 // pred_check
        %p378 = pneg %p377
      $region62: #{tpu_custom_call.1} parent=5 // pred_check_branch
        %380 = sbr.rel (%p378) target = $region64
      $region63: #{tpu_custom_call.1} parent=5 // pred_region
        // Predicated region
        $region65: #{tpu_custom_call.1} parent=63 // pred_check
          %p381 = pneg %p42
        $region66: #{tpu_custom_call.1} parent=63 // pred_check_branch
          %383 = sbr.rel (%p381) target = $region68
        $region67: #{tpu_custom_call.1} parent=63 // pred_region
          %p384 = scmp.lt.s32.totalorder %s22, 1
          %s385 = scalar_select %p384, %s22, 1
          %s386 = smul.addr %s385, 4
          %s387 = scalar_lea.vmem %s0, %s386
        $region68: #{tpu_custom_call.1} parent=63 // pred_fallthru
          _
      $region64: #{tpu_custom_call.1} parent=5 // pred_fallthru
        _
      %p388 = scmp.le.s32.totalorder 1, %s22
      %p389 = scmp.lt.s32.totalorder %s22, 3
      %p390 = pnand %p388, %p389
      %p391 = pneg %p390
      // Predicated region
      $region69: #{tpu_custom_call.1} parent=5 // pred_check
        _
      $region70: #{tpu_custom_call.1} parent=5 // pred_check_branch
        %393 = sbr.rel (%p390) target = $region72
      $region71: #{tpu_custom_call.1} parent=5 // pred_region
        %s394 = ssub.s32 %s22, 1
        %p395 = scmp.lt.s32.totalorder %s27, 1
        %s396 = scalar_select %p395, %s27, 1
        %s397 = smul.addr %s396, 4
        %s398 = scalar_lea.vmem %s0, %s397
        %p399 = pneg %p48
        %p400 = pneg %p45
        %p401 = pneg %p69
        %p402 = pneg %p66
        %p403 = pneg %p90
        %p404 = pneg %p87
        %p405 = pneg %p111
        %p406 = pneg %p108
        %p407 = pneg %p132
        %p408 = pneg %p129
        %p409 = pneg %p153
        %p410 = pneg %p150
        %p411 = pneg %p174
        %p412 = pneg %p171
        %p413 = pneg %p195
        %p414 = pneg %p192
        %p415 = pneg %p216
        %p416 = pneg %p213
        %p417 = pneg %p237
        %p418 = pneg %p234
        %p419 = pneg %p258
        %p420 = pneg %p255
        %p421 = pneg %p279
        %p422 = pneg %p276
        %p423 = pneg %p300
        %p424 = pneg %p297
        %p425 = pneg %p326
        %p426 = pneg %p323
        %s427 = sand.u32 %s313, 1
        %s428 = scalar_lea.sflag [#allocation3], %s427
        %s429 = sand.u32 %s313, 1
        %s430 = smul.addr %s429, 2
        %s431 = scalar_lea.vmem [#allocation2], %s430
        %p432 = scmp.lt.s32.totalorder %s27, 1
        %s433 = scalar_select %p432, %s27, 1
        %s434 = smul.addr %s433, 4
        %s435 = scalar_lea.vmem %s0, %s434
        %v436 = vld [vmem:[%s435] sm:$0x7]
        %v437 = vld [vmem:[%s1] sm:$0xff]
        %v438 = vld [vmem:[%s1 + $0x8] sm:$0xff]
        %v439 = vld [vmem:[%s2] sm:$0xff]
        %v440 = vld [vmem:[%s2 + $0x8] sm:$0xff]
        %442 = vset.pattern.permute.xlu0 0
        %443 = vperm.xlu0 %442, %v439
        %v444 = vpop.permute.xlu0 %443
        %447 = vset.pattern.permute.xlu0 0
        %448 = vperm.xlu0 %447, %v440
        %v449 = vpop.permute.xlu0 %448
        %vm451 = vcmask 23552
        %v453 = vsel %vm451, %v437, 0
        %v456 = vsel %vm451, %v438, 0
        %vm458 = vcmask 1042432
        %v460 = vsel %vm458, %v436, 0
        %462 = vmatprep.subr.mxu0 0.0
        %463 = vmatpush1.msra.mxu0 0.0
        %464 = vmatprep.subr.mxu0 0.0
        %465 = vmatpush1.msra.mxu0 0.0
        %466 = vmatprep.subr.mxu0 0.0
        %467 = vmatpush1.msra.mxu0 0.0
        %468 = vmatprep.subr.mxu0 0.0
        %469 = vmatpush1.msra.mxu0 0.0
        %470 = vmatprep.subr.mxu0 0.0
        %471 = vmatpush1.msra.mxu0 0.0
        %472 = vmatprep.subr.mxu0 0.0
        %473 = vmatpush1.msra.mxu0 0.0
        %474 = vmatprep.subr.mxu0 0.0
        %475 = vmatpush1.msra.mxu0 0.0
        %476 = vmatprep.subr.mxu0 0.0
        %477 = vmatpush1.msra.mxu0 0.0
        %478 = vmatprep.subr.mxu0 0.0
        %479 = vmatpush1.msra.mxu0 0.0
        %480 = vmatprep.subr.mxu0 0.0
        %481 = vmatpush1.msra.mxu0 0.0
        %482 = vmatprep.subr.mxu0 0.0
        %483 = vmatpush1.msra.mxu0 0.0
        %484 = vmatprep.subr.mxu0 0.0
        %485 = vmatpush1.msra.mxu0 0.0
        %486 = vmatprep.subr.mxu0 0.0
        %487 = vmatpush1.msra.mxu0 0.0
        %488 = vmatprep.subr.mxu0 0.0
        %489 = vmatpush1.msra.mxu0 0.0
        %490 = vmatprep.subr.mxu0 0.0
        %491 = vmatpush1.msra.mxu0 0.0
        %492 = vmatprep.subr.mxu0 0.0
        %493 = vmatpush1.msra.mxu0 %v460
        %494 = vmatprep.subr.mxu0 0.0
        %495 = vmatpush2.msra.mxu0 0.0
        %496 = vmatprep.subr.mxu0 0.0
        %497 = vmatpush2.msra.mxu0 0.0
        %498 = vmatprep.subr.mxu0 0.0
        %499 = vmatpush2.msra.mxu0 0.0
        %500 = vmatprep.subr.mxu0 0.0
        %501 = vmatpush2.msra.mxu0 0.0
        %502 = vmatprep.subr.mxu0 0.0
        %503 = vmatpush2.msra.mxu0 0.0
        %504 = vmatprep.subr.mxu0 0.0
        %505 = vmatpush2.msra.mxu0 0.0
        %506 = vmatprep.subr.mxu0 0.0
        %507 = vmatpush2.msra.mxu0 0.0
        %508 = vmatprep.subr.mxu0 0.0
        %509 = vmatpush2.msra.mxu0 0.0
        %510 = vmatprep.subr.mxu0 0.0
        %511 = vmatpush2.msra.mxu0 0.0
        %512 = vmatprep.subr.mxu0 0.0
        %513 = vmatpush2.msra.mxu0 0.0
        %514 = vmatprep.subr.mxu0 0.0
        %515 = vmatpush2.msra.mxu0 0.0
        %516 = vmatprep.subr.mxu0 0.0
        %517 = vmatpush2.msra.mxu0 0.0
        %518 = vmatprep.subr.mxu0 0.0
        %519 = vmatpush2.msra.mxu0 0.0
        %520 = vmatprep.subr.mxu0 0.0
        %521 = vmatpush2.msra.mxu0 0.0
        %522 = vmatprep.subr.mxu0 0.0
        %523 = vmatpush2.msra.mxu0 0.0
        %524 = vmatprep.subr.mxu0 0.0
        %525 = vmatpush2.msra.mxu0 0.0
        %526 = vmatprep.mubr.f32.mxu0 0.0
        %527 = vmatmul.mubr.f32.gmra.mxu0 %v453
        %v528 = vpop.f32.mrf.mxu0
        %v529 = vadd.f32 %v444, %v528
        %v530 = vpop.f32.mrf.mxu0
        %531 = vmatprep.mubr.f32.mxu0 0.0
        %532 = vmatmul.mubr.f32.gmra.mxu0 %v456
        %v533 = vpop.f32.mrf.mxu0
        %v534 = vadd.f32 %v449, %v533
        %v535 = vpop.f32.mrf.mxu0
        %536 = vdwg.mxu0
        %v537 = vmax.f32 %v529, 0.0
        %v538 = vmax.f32 %v534, 0.0
        %v539 = vld [vmem:[%s3] sm:$0xff]
        %v540 = vld [vmem:[%s3 + $0x8] sm:$0xff]
        %v541 = vld [vmem:[%s3 + $0x10] sm:$0xff]
        %v542 = vld [vmem:[%s3 + $0x18] sm:$0xff]
        %v543 = vld [vmem:[%s4] sm:$0xff]
        %v544 = vld [vmem:[%s4 + $0x8] sm:$0xff]
        %v545 = vld [vmem:[%s4 + $0x10] sm:$0xff]
        %v546 = vld [vmem:[%s4 + $0x18] sm:$0xff]
        %548 = vset.pattern.permute.xlu0 0
        %549 = vperm.xlu0 %548, %v543
        %v550 = vpop.permute.xlu0 %549
        %553 = vset.pattern.permute.xlu0 0
        %554 = vperm.xlu0 %553, %v544
        %v555 = vpop.permute.xlu0 %554
        %558 = vset.pattern.permute.xlu0 0
        %559 = vperm.xlu0 %558, %v545
        %v560 = vpop.permute.xlu0 %559
        %563 = vset.pattern.permute.xlu0 0
        %564 = vperm.xlu0 %563, %v546
        %v565 = vpop.permute.xlu0 %564
        %vm567 = vcmask 130048
        %v569 = vsel %vm567, %v539, 0
        %v572 = vsel %vm567, %v540, 0
        %v575 = vsel %vm567, %v541, 0
        %v578 = vsel %vm567, %v542, 0
        %580 = vmatprep.subr.mxu0 0.0
        %581 = vmatpush1.msra.mxu0 0.0
        %582 = vmatprep.subr.mxu0 0.0
        %583 = vmatpush1.msra.mxu0 0.0
        %584 = vmatprep.subr.mxu0 0.0
        %585 = vmatpush1.msra.mxu0 0.0
        %586 = vmatprep.subr.mxu0 0.0
        %587 = vmatpush1.msra.mxu0 0.0
        %588 = vmatprep.subr.mxu0 0.0
        %589 = vmatpush1.msra.mxu0 0.0
        %590 = vmatprep.subr.mxu0 0.0
        %591 = vmatpush1.msra.mxu0 0.0
        %592 = vmatprep.subr.mxu0 0.0
        %593 = vmatpush1.msra.mxu0 0.0
        %594 = vmatprep.subr.mxu0 0.0
        %595 = vmatpush1.msra.mxu0 0.0
        %596 = vmatprep.subr.mxu0 0.0
        %597 = vmatpush1.msra.mxu0 0.0
        %598 = vmatprep.subr.mxu0 0.0
        %599 = vmatpush1.msra.mxu0 0.0
        %600 = vmatprep.subr.mxu0 0.0
        %601 = vmatpush1.msra.mxu0 0.0
        %602 = vmatprep.subr.mxu0 0.0
        %603 = vmatpush1.msra.mxu0 0.0
        %604 = vmatprep.subr.mxu0 0.0
        %605 = vmatpush1.msra.mxu0 0.0
        %606 = vmatprep.subr.mxu0 0.0
        %607 = vmatpush1.msra.mxu0 0.0
        %608 = vmatprep.subr.mxu0 0.0
        %609 = vmatpush1.msra.mxu0 %v538
        %610 = vmatprep.subr.mxu0 0.0
        %611 = vmatpush1.msra.mxu0 %v537
        %612 = vmatprep.subr.mxu0 0.0
        %613 = vmatpush2.msra.mxu0 0.0
        %614 = vmatprep.subr.mxu0 0.0
        %615 = vmatpush2.msra.mxu0 0.0
        %616 = vmatprep.subr.mxu0 0.0
        %617 = vmatpush2.msra.mxu0 0.0
        %618 = vmatprep.subr.mxu0 0.0
        %619 = vmatpush2.msra.mxu0 0.0
        %620 = vmatprep.subr.mxu0 0.0
        %621 = vmatpush2.msra.mxu0 0.0
        %622 = vmatprep.subr.mxu0 0.0
        %623 = vmatpush2.msra.mxu0 0.0
        %624 = vmatprep.subr.mxu0 0.0
        %625 = vmatpush2.msra.mxu0 0.0
        %626 = vmatprep.subr.mxu0 0.0
        %627 = vmatpush2.msra.mxu0 0.0
        %628 = vmatprep.subr.mxu0 0.0
        %629 = vmatpush2.msra.mxu0 0.0
        %630 = vmatprep.subr.mxu0 0.0
        %631 = vmatpush2.msra.mxu0 0.0
        %632 = vmatprep.subr.mxu0 0.0
        %633 = vmatpush2.msra.mxu0 0.0
        %634 = vmatprep.subr.mxu0 0.0
        %635 = vmatpush2.msra.mxu0 0.0
        %636 = vmatprep.subr.mxu0 0.0
        %637 = vmatpush2.msra.mxu0 0.0
        %638 = vmatprep.subr.mxu0 0.0
        %639 = vmatpush2.msra.mxu0 0.0
        %640 = vmatprep.subr.mxu0 0.0
        %641 = vmatpush2.msra.mxu0 0.0
        %642 = vmatprep.subr.mxu0 0.0
        %643 = vmatpush2.msra.mxu0 0.0
        %644 = vmatprep.mubr.f32.mxu0 0.0
        %645 = vmatmul.mubr.f32.gmra.mxu0 %v569
        %v646 = vpop.f32.mrf.mxu0
        %v647 = vadd.f32 %v550, %v646
        %v648 = vpop.f32.mrf.mxu0
        %649 = vmatprep.mubr.f32.mxu0 0.0
        %650 = vmatmul.mubr.f32.gmra.mxu0 %v572
        %v651 = vpop.f32.mrf.mxu0
        %v652 = vadd.f32 %v555, %v651
        %v653 = vpop.f32.mrf.mxu0
        %654 = vmatprep.mubr.f32.mxu0 0.0
        %655 = vmatmul.mubr.f32.gmra.mxu0 %v575
        %v656 = vpop.f32.mrf.mxu0
        %v657 = vadd.f32 %v560, %v656
        %v658 = vpop.f32.mrf.mxu0
        %659 = vmatprep.mubr.f32.mxu0 0.0
        %660 = vmatmul.mubr.f32.gmra.mxu0 %v578
        %v661 = vpop.f32.mrf.mxu0
        %v662 = vadd.f32 %v565, %v661
        %v663 = vpop.f32.mrf.mxu0
        %664 = vdwg.mxu0
        %v665 = vmax.f32 %v647, 0.0
        %v666 = vmax.f32 %v652, 0.0
        %v667 = vmax.f32 %v657, 0.0
        %v668 = vmax.f32 %v662, 0.0
        %v669 = vld [vmem:[%s5] sm:$0xff]
        %v670 = vld [vmem:[%s5 + $0x8] sm:$0xff]
        %v671 = vld [vmem:[%s5 + $0x10] sm:$0xff]
        %v672 = vld [vmem:[%s5 + $0x18] sm:$0xff]
        %v673 = vld [vmem:[%s6] sm:$0xff]
        %v674 = vld [vmem:[%s6 + $0x8] sm:$0xff]
        %v675 = vld [vmem:[%s6 + $0x10] sm:$0xff]
        %v676 = vld [vmem:[%s6 + $0x18] sm:$0xff]
        %678 = vset.pattern.permute.xlu0 0
        %679 = vperm.xlu0 %678, %v673
        %v680 = vpop.permute.xlu0 %679
        %683 = vset.pattern.permute.xlu0 0
        %684 = vperm.xlu0 %683, %v674
        %v685 = vpop.permute.xlu0 %684
        %688 = vset.pattern.permute.xlu0 0
        %689 = vperm.xlu0 %688, %v675
        %v690 = vpop.permute.xlu0 %689
        %693 = vset.pattern.permute.xlu0 0
        %694 = vperm.xlu0 %693, %v676
        %v695 = vpop.permute.xlu0 %694
        %vm697 = vcmask 261120
        %v699 = vsel %vm697, %v669, 0
        %v702 = vsel %vm697, %v670, 0
        %v705 = vsel %vm697, %v671, 0
        %v708 = vsel %vm697, %v672, 0
        %710 = vmatprep.subr.mxu0 0.0
        %711 = vmatpush1.msra.mxu0 0.0
        %712 = vmatprep.subr.mxu0 0.0
        %713 = vmatpush1.msra.mxu0 0.0
        %714 = vmatprep.subr.mxu0 0.0
        %715 = vmatpush1.msra.mxu0 0.0
        %716 = vmatprep.subr.mxu0 0.0
        %717 = vmatpush1.msra.mxu0 0.0
        %718 = vmatprep.subr.mxu0 0.0
        %719 = vmatpush1.msra.mxu0 0.0
        %720 = vmatprep.subr.mxu0 0.0
        %721 = vmatpush1.msra.mxu0 0.0
        %722 = vmatprep.subr.mxu0 0.0
        %723 = vmatpush1.msra.mxu0 0.0
        %724 = vmatprep.subr.mxu0 0.0
        %725 = vmatpush1.msra.mxu0 0.0
        %726 = vmatprep.subr.mxu0 0.0
        %727 = vmatpush1.msra.mxu0 0.0
        %728 = vmatprep.subr.mxu0 0.0
        %729 = vmatpush1.msra.mxu0 0.0
        %730 = vmatprep.subr.mxu0 0.0
        %731 = vmatpush1.msra.mxu0 0.0
        %732 = vmatprep.subr.mxu0 0.0
        %733 = vmatpush1.msra.mxu0 0.0
        %734 = vmatprep.subr.mxu0 0.0
        %735 = vmatpush1.msra.mxu0 %v668
        %736 = vmatprep.subr.mxu0 0.0
        %737 = vmatpush1.msra.mxu0 %v667
        %738 = vmatprep.subr.mxu0 0.0
        %739 = vmatpush1.msra.mxu0 %v666
        %740 = vmatprep.subr.mxu0 0.0
        %741 = vmatpush1.msra.mxu0 %v665
        %742 = vmatprep.subr.mxu0 0.0
        %743 = vmatpush2.msra.mxu0 0.0
        %744 = vmatprep.subr.mxu0 0.0
        %745 = vmatpush2.msra.mxu0 0.0
        %746 = vmatprep.subr.mxu0 0.0
        %747 = vmatpush2.msra.mxu0 0.0
        %748 = vmatprep.subr.mxu0 0.0
        %749 = vmatpush2.msra.mxu0 0.0
        %750 = vmatprep.subr.mxu0 0.0
        %751 = vmatpush2.msra.mxu0 0.0
        %752 = vmatprep.subr.mxu0 0.0
        %753 = vmatpush2.msra.mxu0 0.0
        %754 = vmatprep.subr.mxu0 0.0
        %755 = vmatpush2.msra.mxu0 0.0
        %756 = vmatprep.subr.mxu0 0.0
        %757 = vmatpush2.msra.mxu0 0.0
        %758 = vmatprep.subr.mxu0 0.0
        %759 = vmatpush2.msra.mxu0 0.0
        %760 = vmatprep.subr.mxu0 0.0
        %761 = vmatpush2.msra.mxu0 0.0
        %762 = vmatprep.subr.mxu0 0.0
        %763 = vmatpush2.msra.mxu0 0.0
        %764 = vmatprep.subr.mxu0 0.0
        %765 = vmatpush2.msra.mxu0 0.0
        %766 = vmatprep.subr.mxu0 0.0
        %767 = vmatpush2.msra.mxu0 0.0
        %768 = vmatprep.subr.mxu0 0.0
        %769 = vmatpush2.msra.mxu0 0.0
        %770 = vmatprep.subr.mxu0 0.0
        %771 = vmatpush2.msra.mxu0 0.0
        %772 = vmatprep.subr.mxu0 0.0
        %773 = vmatpush2.msra.mxu0 0.0
        %774 = vmatprep.mubr.f32.mxu0 0.0
        %775 = vmatmul.mubr.f32.gmra.mxu0 %v699
        %v776 = vpop.f32.mrf.mxu0
        %v777 = vadd.f32 %v680, %v776
        %v778 = vpop.f32.mrf.mxu0
        %779 = vmatprep.mubr.f32.mxu0 0.0
        %780 = vmatmul.mubr.f32.gmra.mxu0 %v702
        %v781 = vpop.f32.mrf.mxu0
        %v782 = vadd.f32 %v685, %v781
        %v783 = vpop.f32.mrf.mxu0
        %784 = vmatprep.mubr.f32.mxu0 0.0
        %785 = vmatmul.mubr.f32.gmra.mxu0 %v705
        %v786 = vpop.f32.mrf.mxu0
        %v787 = vadd.f32 %v690, %v786
        %v788 = vpop.f32.mrf.mxu0
        %789 = vmatprep.mubr.f32.mxu0 0.0
        %790 = vmatmul.mubr.f32.gmra.mxu0 %v708
        %v791 = vpop.f32.mrf.mxu0
        %v792 = vadd.f32 %v695, %v791
        %v793 = vpop.f32.mrf.mxu0
        %794 = vdwg.mxu0
        %v795 = vmax.f32 %v777, 0.0
        %v796 = vmax.f32 %v782, 0.0
        %v797 = vmax.f32 %v787, 0.0
        %v798 = vmax.f32 %v792, 0.0
        %v799 = vld [vmem:[%s7] sm:$0xff]
        %v800 = vld [vmem:[%s7 + $0x8] sm:$0xff]
        %v801 = vld [vmem:[%s8] sm:$0xff]
        %v802 = vld [vmem:[%s8 + $0x8] sm:$0xff]
        %804 = vset.pattern.permute.xlu0 0
        %805 = vperm.xlu0 %804, %v801
        %v806 = vpop.permute.xlu0 %805
        %809 = vset.pattern.permute.xlu0 0
        %810 = vperm.xlu0 %809, %v802
        %v811 = vpop.permute.xlu0 %810
        %v814 = vsel %vm697, %v799, 0
        %v817 = vsel %vm697, %v800, 0
        %819 = vmatprep.subr.mxu0 0.0
        %820 = vmatpush1.msra.mxu0 0.0
        %821 = vmatprep.subr.mxu0 0.0
        %822 = vmatpush1.msra.mxu0 0.0
        %823 = vmatprep.subr.mxu0 0.0
        %824 = vmatpush1.msra.mxu0 0.0
        %825 = vmatprep.subr.mxu0 0.0
        %826 = vmatpush1.msra.mxu0 0.0
        %827 = vmatprep.subr.mxu0 0.0
        %828 = vmatpush1.msra.mxu0 0.0
        %829 = vmatprep.subr.mxu0 0.0
        %830 = vmatpush1.msra.mxu0 0.0
        %831 = vmatprep.subr.mxu0 0.0
        %832 = vmatpush1.msra.mxu0 0.0
        %833 = vmatprep.subr.mxu0 0.0
        %834 = vmatpush1.msra.mxu0 0.0
        %835 = vmatprep.subr.mxu0 0.0
        %836 = vmatpush1.msra.mxu0 0.0
        %837 = vmatprep.subr.mxu0 0.0
        %838 = vmatpush1.msra.mxu0 0.0
        %839 = vmatprep.subr.mxu0 0.0
        %840 = vmatpush1.msra.mxu0 0.0
        %841 = vmatprep.subr.mxu0 0.0
        %842 = vmatpush1.msra.mxu0 0.0
        %843 = vmatprep.subr.mxu0 0.0
        %844 = vmatpush1.msra.mxu0 %v798
        %845 = vmatprep.subr.mxu0 0.0
        %846 = vmatpush1.msra.mxu0 %v797
        %847 = vmatprep.subr.mxu0 0.0
        %848 = vmatpush1.msra.mxu0 %v796
        %849 = vmatprep.subr.mxu0 0.0
        %850 = vmatpush1.msra.mxu0 %v795
        %851 = vmatprep.subr.mxu0 0.0
        %852 = vmatpush2.msra.mxu0 0.0
        %853 = vmatprep.subr.mxu0 0.0
        %854 = vmatpush2.msra.mxu0 0.0
        %855 = vmatprep.subr.mxu0 0.0
        %856 = vmatpush2.msra.mxu0 0.0
        %857 = vmatprep.subr.mxu0 0.0
        %858 = vmatpush2.msra.mxu0 0.0
        %859 = vmatprep.subr.mxu0 0.0
        %860 = vmatpush2.msra.mxu0 0.0
        %861 = vmatprep.subr.mxu0 0.0
        %862 = vmatpush2.msra.mxu0 0.0
        %863 = vmatprep.subr.mxu0 0.0
        %864 = vmatpush2.msra.mxu0 0.0
        %865 = vmatprep.subr.mxu0 0.0
        %866 = vmatpush2.msra.mxu0 0.0
        %867 = vmatprep.subr.mxu0 0.0
        %868 = vmatpush2.msra.mxu0 0.0
        %869 = vmatprep.subr.mxu0 0.0
        %870 = vmatpush2.msra.mxu0 0.0
        %871 = vmatprep.subr.mxu0 0.0
        %872 = vmatpush2.msra.mxu0 0.0
        %873 = vmatprep.subr.mxu0 0.0
        %874 = vmatpush2.msra.mxu0 0.0
        %875 = vmatprep.subr.mxu0 0.0
        %876 = vmatpush2.msra.mxu0 0.0
        %877 = vmatprep.subr.mxu0 0.0
        %878 = vmatpush2.msra.mxu0 0.0
        %879 = vmatprep.subr.mxu0 0.0
        %880 = vmatpush2.msra.mxu0 0.0
        %881 = vmatprep.subr.mxu0 0.0
        %882 = vmatpush2.msra.mxu0 0.0
        %883 = vmatprep.mubr.f32.mxu0 0.0
        %884 = vmatmul.mubr.f32.gmra.mxu0 %v814
        %v885 = vpop.f32.mrf.mxu0
        %v886 = vadd.f32 %v806, %v885
        %v887 = vpop.f32.mrf.mxu0
        %888 = vmatprep.mubr.f32.mxu0 0.0
        %889 = vmatmul.mubr.f32.gmra.mxu0 %v817
        %v890 = vpop.f32.mrf.mxu0
        %v891 = vadd.f32 %v811, %v890
        %v892 = vpop.f32.mrf.mxu0
        %893 = vdwg.mxu0
        %v894 = vmax.f32 %v886, 0.0
        %v895 = vmax.f32 %v891, 0.0
        %v896 = vld [vmem:[%s9] sm:$0xff]
        %v897 = vld [vmem:[%s10] sm:$0xff]
        %899 = vset.pattern.permute.xlu0 0
        %900 = vperm.xlu0 %899, %v897
        %v901 = vpop.permute.xlu0 %900
        %v904 = vsel %vm567, %v896, 0
        %906 = vmatprep.subr.mxu0 0.0
        %907 = vmatpush1.msra.mxu0 0.0
        %908 = vmatprep.subr.mxu0 0.0
        %909 = vmatpush1.msra.mxu0 0.0
        %910 = vmatprep.subr.mxu0 0.0
        %911 = vmatpush1.msra.mxu0 0.0
        %912 = vmatprep.subr.mxu0 0.0
        %913 = vmatpush1.msra.mxu0 0.0
        %914 = vmatprep.subr.mxu0 0.0
        %915 = vmatpush1.msra.mxu0 0.0
        %916 = vmatprep.subr.mxu0 0.0
        %917 = vmatpush1.msra.mxu0 0.0
        %918 = vmatprep.subr.mxu0 0.0
        %919 = vmatpush1.msra.mxu0 0.0
        %920 = vmatprep.subr.mxu0 0.0
        %921 = vmatpush1.msra.mxu0 0.0
        %922 = vmatprep.subr.mxu0 0.0
        %923 = vmatpush1.msra.mxu0 0.0
        %924 = vmatprep.subr.mxu0 0.0
        %925 = vmatpush1.msra.mxu0 0.0
        %926 = vmatprep.subr.mxu0 0.0
        %927 = vmatpush1.msra.mxu0 0.0
        %928 = vmatprep.subr.mxu0 0.0
        %929 = vmatpush1.msra.mxu0 0.0
        %930 = vmatprep.subr.mxu0 0.0
        %931 = vmatpush1.msra.mxu0 0.0
        %932 = vmatprep.subr.mxu0 0.0
        %933 = vmatpush1.msra.mxu0 0.0
        %934 = vmatprep.subr.mxu0 0.0
        %935 = vmatpush1.msra.mxu0 %v895
        %936 = vmatprep.subr.mxu0 0.0
        %937 = vmatpush1.msra.mxu0 %v894
        %938 = vmatprep.subr.mxu0 0.0
        %939 = vmatpush2.msra.mxu0 0.0
        %940 = vmatprep.subr.mxu0 0.0
        %941 = vmatpush2.msra.mxu0 0.0
        %942 = vmatprep.subr.mxu0 0.0
        %943 = vmatpush2.msra.mxu0 0.0
        %944 = vmatprep.subr.mxu0 0.0
        %945 = vmatpush2.msra.mxu0 0.0
        %946 = vmatprep.subr.mxu0 0.0
        %947 = vmatpush2.msra.mxu0 0.0
        %948 = vmatprep.subr.mxu0 0.0
        %949 = vmatpush2.msra.mxu0 0.0
        %950 = vmatprep.subr.mxu0 0.0
        %951 = vmatpush2.msra.mxu0 0.0
        %952 = vmatprep.subr.mxu0 0.0
        %953 = vmatpush2.msra.mxu0 0.0
        %954 = vmatprep.subr.mxu0 0.0
        %955 = vmatpush2.msra.mxu0 0.0
        %956 = vmatprep.subr.mxu0 0.0
        %957 = vmatpush2.msra.mxu0 0.0
        %958 = vmatprep.subr.mxu0 0.0
        %959 = vmatpush2.msra.mxu0 0.0
        %960 = vmatprep.subr.mxu0 0.0
        %961 = vmatpush2.msra.mxu0 0.0
        %962 = vmatprep.subr.mxu0 0.0
        %963 = vmatpush2.msra.mxu0 0.0
        %964 = vmatprep.subr.mxu0 0.0
        %965 = vmatpush2.msra.mxu0 0.0
        %966 = vmatprep.subr.mxu0 0.0
        %967 = vmatpush2.msra.mxu0 0.0
        %968 = vmatprep.subr.mxu0 0.0
        %969 = vmatpush2.msra.mxu0 0.0
        %970 = vmatprep.mubr.f32.mxu0 0.0
        %971 = vmatmul.mubr.f32.gmra.mxu0 %v904
        %v972 = vpop.f32.mrf.mxu0
        %v973 = vadd.f32 %v901, %v972
        %v974 = vpop.f32.mrf.mxu0
        %975 = vdwg.mxu0
        %v976 = vmax.f32 %v973, 0.0
        %v977 = vld [vmem:[%s11] sm:$0x3]
        %v978 = vld [vmem:[%s12] sm:$0x3]
        %980 = vset.pattern.permute.xlu0 0
        %981 = vperm.xlu0 %980, %v978
        %v982 = vpop.permute.xlu0 %981
        %vm984 = vcmask 64512
        %v986 = vsel %vm984, %v977, 0
        %988 = vmatprep.subr.mxu0 0.0
        %989 = vmatpush1.msra.mxu0 0.0
        %990 = vmatprep.subr.mxu0 0.0
        %991 = vmatpush1.msra.mxu0 0.0
        %992 = vmatprep.subr.mxu0 0.0
        %993 = vmatpush1.msra.mxu0 0.0
        %994 = vmatprep.subr.mxu0 0.0
        %995 = vmatpush1.msra.mxu0 0.0
        %996 = vmatprep.subr.mxu0 0.0
        %997 = vmatpush1.msra.mxu0 0.0
        %998 = vmatprep.subr.mxu0 0.0
        %999 = vmatpush1.msra.mxu0 0.0
        %1000 = vmatprep.subr.mxu0 0.0
        %1001 = vmatpush1.msra.mxu0 0.0
        %1002 = vmatprep.subr.mxu0 0.0
        %1003 = vmatpush1.msra.mxu0 0.0
        %1004 = vmatprep.subr.mxu0 0.0
        %1005 = vmatpush1.msra.mxu0 0.0
        %1006 = vmatprep.subr.mxu0 0.0
        %1007 = vmatpush1.msra.mxu0 0.0
        %1008 = vmatprep.subr.mxu0 0.0
        %1009 = vmatpush1.msra.mxu0 0.0
        %1010 = vmatprep.subr.mxu0 0.0
        %1011 = vmatpush1.msra.mxu0 0.0
        %1012 = vmatprep.subr.mxu0 0.0
        %1013 = vmatpush1.msra.mxu0 0.0
        %1014 = vmatprep.subr.mxu0 0.0
        %1015 = vmatpush1.msra.mxu0 0.0
        %1016 = vmatprep.subr.mxu0 0.0
        %1017 = vmatpush1.msra.mxu0 0.0
        %1018 = vmatprep.subr.mxu0 0.0
        %1019 = vmatpush1.msra.mxu0 %v976
        %1020 = vmatprep.subr.mxu0 0.0
        %1021 = vmatpush2.msra.mxu0 0.0
        %1022 = vmatprep.subr.mxu0 0.0
        %1023 = vmatpush2.msra.mxu0 0.0
        %1024 = vmatprep.subr.mxu0 0.0
        %1025 = vmatpush2.msra.mxu0 0.0
        %1026 = vmatprep.subr.mxu0 0.0
        %1027 = vmatpush2.msra.mxu0 0.0
        %1028 = vmatprep.subr.mxu0 0.0
        %1029 = vmatpush2.msra.mxu0 0.0
        %1030 = vmatprep.subr.mxu0 0.0
        %1031 = vmatpush2.msra.mxu0 0.0
        %1032 = vmatprep.subr.mxu0 0.0
        %1033 = vmatpush2.msra.mxu0 0.0
        %1034 = vmatprep.subr.mxu0 0.0
        %1035 = vmatpush2.msra.mxu0 0.0
        %1036 = vmatprep.subr.mxu0 0.0
        %1037 = vmatpush2.msra.mxu0 0.0
        %1038 = vmatprep.subr.mxu0 0.0
        %1039 = vmatpush2.msra.mxu0 0.0
        %1040 = vmatprep.subr.mxu0 0.0
        %1041 = vmatpush2.msra.mxu0 0.0
        %1042 = vmatprep.subr.mxu0 0.0
        %1043 = vmatpush2.msra.mxu0 0.0
        %1044 = vmatprep.subr.mxu0 0.0
        %1045 = vmatpush2.msra.mxu0 0.0
        %1046 = vmatprep.subr.mxu0 0.0
        %1047 = vmatpush2.msra.mxu0 0.0
        %1048 = vmatprep.subr.mxu0 0.0
        %1049 = vmatpush2.msra.mxu0 0.0
        %1050 = vmatprep.subr.mxu0 0.0
        %1051 = vmatpush2.msra.mxu0 0.0
        %1052 = vmatprep.mubr.f32.mxu0 0.0
        %1053 = vmatmul.mubr.f32.gmra.mxu0 %v986
        %v1054 = vpop.f32.mrf.mxu0
        %v1055 = vadd.f32 %v982, %v1054
        %v1056 = vpop.f32.mrf.mxu0
        %1057 = vdwg.mxu0
        %1058 = vst [vmem:[%s431] sm:$0x3] %v1055
        %s1059 = sand.u32 %s313, 1
        %s1060 = scalar_lea.sflag [#allocation3], %s1059
        %s1061 = sand.u32 %s313, 1
        %s1062 = smul.addr %s1061, 2
        %s1063 = scalar_lea.vmem [#allocation2], %s1062
        // Predicated region
        $region73: #{tpu_custom_call.1} parent=71 // pred_check
          %p1064 = pneg %p323
        $region74: #{tpu_custom_call.1} parent=71 // pred_check_branch
          %1066 = sbr.rel (%p1064) target = $region76
        $region75: #{tpu_custom_call.1} parent=71 // pred_region
          %s1068 = ssub.s32 32, 32
          %1069 = vsyncadd %s1060, %s1068
          %s1070 = smul.addr %s27, 32
          %s1071 = scalar_lea.hbm %s13, %s1070
          %s1073 = sshll.u32 %s1063, 4
          %s1074 = int_to_ptr.vmem [resolvable:$true] %s1073
          %1076 = dma.vmem_to_hbm [thread:$0]  %s1074, 32, %s1071, %s1060
        $region76: #{tpu_custom_call.1} parent=71 // pred_fallthru
          _
      $region72: #{tpu_custom_call.1} parent=5 // pred_fallthru
        _
      %p1077 = scmp.le.s32.totalorder 2, %s22
      // Predicated region
      $region77: #{tpu_custom_call.1} parent=5 // pred_check
        %p1078 = pneg %p1077
      $region78: #{tpu_custom_call.1} parent=5 // pred_check_branch
        %1080 = sbr.rel (%p1078) target = $region80
      $region79: #{tpu_custom_call.1} parent=5 // pred_region
        %s1081 = ssub.s32 %s22, 2
        // Predicated region
        $region81: #{tpu_custom_call.1} parent=79 // pred_check
          %p1082 = pneg %p329
        $region82: #{tpu_custom_call.1} parent=79 // pred_check_branch
          %1084 = sbr.rel (%p1082) target = $region84
        $region83: #{tpu_custom_call.1} parent=79 // pred_region
          %s1085 = sand.u32 %s314, 1
          %s1086 = scalar_lea.sflag [#allocation3], %s1085
          %s1087 = sand.u32 %s314, 1
          %s1088 = smul.addr %s1087, 2
          %s1089 = scalar_lea.vmem [#allocation2], %s1088
          %1090 = dma.done %s1086, 32
        $region84: #{tpu_custom_call.1} parent=79 // pred_fallthru
          _
      $region80: #{tpu_custom_call.1} parent=5 // pred_fallthru
        _
    $region6: #{tpu_custom_call.1} parent=1 // loop_footer
      %s26 = sadd.s32 1, %s22
    $region7: #{tpu_custom_call.1} parent=1 // loop_footer_branch
      %21 = sbr.rel target = $region3
    $region8: #{tpu_custom_call.1} parent=1 // loop_exit
      _
    %1091 = vsyncpa [#allocation3], 1
    %s1092 = scalar_lea.sflag [#allocation3], 1
    %1093 = vsyncpa %s1092, 1

</llo_original>
